<compile_context>
chip_gen: v5e
topology: v5e:2x2
jax: 0.10.0
libtpu: 0.0.40
codegen_flags: <defaults>
</compile_context>

<pallas_src>
import functools

import jax
import jax.numpy as jnp
import numpy as np
from jax.experimental import pallas as pl
from jax.experimental.pallas import tpu as pltpu

LANE = 128  # TPU vreg lane width


def _sigmoid(x):
    # tanh-based sigmoid: exact identity, single EUP op, guaranteed lowering.
    return 0.5 * jnp.tanh(0.5 * x) + 0.5


def lstm_policy_kernel(x_ref, w_ih_ref, w_hh_ref, b_ref, wo_ref, bo_ref, o_ref,
                       *, hidden_size):
    """One batch block of the whole forward pass.

    x_ref   : (T, Bb, I)  f32  time-major inputs (sublane-aligned batch block)
    w_ih_ref: (I, G)      f32  weight_ih_l0^T, gates packed into G=round_up(4H,128)
    w_hh_ref: (G, G)      f32  weight_hh_l0^T, rows >= H and cols >= 4H are zero
    b_ref   : (1, G)      f32  bias_ih + bias_hh, packed / zero-padded
    wo_ref  : (G, 1)      f32  output_layer.weight[0] - weight[1], zero-padded rows
    bo_ref  : (1, 1)      f32  output_layer.bias[0] - bias[1]
    o_ref   : (Bb, 2)     f32  softmax probabilities
    """
    T, Bb, I = x_ref.shape
    H = hidden_size
    G = w_hh_ref.shape[1]

    # ---- input projection + fused bias, hoisted out of the recurrence ----
    # I == 2, so two broadcast FMAs beat a contraction-2 MXU call.
    x_all = x_ref[...]                                        # (T, Bb, I)
    w_ih = w_ih_ref[...]                                      # (I, G)
    xw = x_all[:, :, 0:1] * w_ih[0:1, :] + b_ref[...]         # (T, Bb, G)
    for i in range(1, I):
        xw = xw + x_all[:, :, i:i + 1] * w_ih[i:i + 1, :]

    # Lane mask (hoisted constant): keeps packed c lanes >= H exactly zero.
    lane_idx = jax.lax.broadcasted_iota(jnp.int32, (Bb, G), 1)
    state_mask = jnp.where(lane_idx < H, 1.0, 0.0).astype(jnp.float32)

    # LSTM state in loop-carried vregs; lanes 0..H-1 hold the real state.
    h = jnp.zeros((Bb, G), jnp.float32)
    c = jnp.zeros((Bb, G), jnp.float32)

    # T is small & static: full unroll -> straight-line code, static offsets.
    # TODO(synk): for long sequences, keep W_hh resident in MXU weight regs via
    # pltpu.matmul_push_rhs / matmul_acc_lhs / matmul_pop instead of jnp.dot.
    for t in range(T):
        # Read W_hh from its VMEM ref here (not hoisted) so the MXU operand is
        # sourced from VMEM and never pins 16 vregs across the serial chain.
        gates = xw[t] + jnp.dot(h, w_hh_ref[...],
                                preferred_element_type=jnp.float32)    # (Bb, G)
        sig = _sigmoid(gates)        # i|f|.|o packed in lanes [0, 4H)
        tnh = jnp.tanh(gates)        # g packed in lanes [2H, 3H)
        i_g = sig
        f_g = pltpu.roll(sig, G - H, axis=1)        # f -> lanes [0, H)
        g_g = pltpu.roll(tnh, G - 2 * H, axis=1)    # g -> lanes [0, H)
        o_g = pltpu.roll(sig, G - 3 * H, axis=1)    # o -> lanes [0, H)
        c = (f_g * c + i_g * g_g) * state_mask      # zero padded lanes (exact)
        h = o_g * jnp.tanh(c)                       # padded lanes: o_g * 0 = 0

    # relu(lstm_output[:, -1, :])
    hidden = jnp.maximum(h, 0.0)                                # (Bb, G)
    # 2-class softmax == sigmoid of the logit difference (exact simplex,
    # no cross-lane reductions, no approximate reciprocal).
    d = (jnp.dot(hidden, wo_ref[...], preferred_element_type=jnp.float32)
         + bo_ref[...])                                         # (Bb, 1)
    p0 = _sigmoid(d)
    lane2 = jax.lax.broadcasted_iota(jnp.int32, (Bb, 2), 1)
    p0b = jnp.broadcast_to(p0, (Bb, 2))
    o_ref[...] = jnp.where(lane2 == 0, p0b, 1.0 - p0b).astype(o_ref.dtype)


def prepare_params(params, lane=LANE):
    """One-time weight prep: transpose, fuse biases, pack gates into G lanes.

    The four PyTorch gate blocks [i|f|g|o] (each H wide) are laid out
    contiguously in the first 4*H lanes of a single G = round_up(4H, 128) tile;
    everything else (extra lanes, W_hh rows >= H, W_out rows >= H) is zero, so
    padded lanes of the state contribute exactly nothing.
    """
    H = params["w_hh"].shape[1]
    I = params["w_ih"].shape[1]
    G = max(lane, ((4 * H + lane - 1) // lane) * lane)

    w_ih = jnp.zeros((I, G), jnp.float32).at[:, :4 * H].set(
        params["w_ih"].T.astype(jnp.float32))                       # (I, G)
    w_hh = jnp.zeros((G, G), jnp.float32).at[:H, :4 * H].set(
        params["w_hh"].T.astype(jnp.float32))                       # (G, G)
    b = jnp.zeros((1, G), jnp.float32).at[0, :4 * H].set(
        (params["b_ih"] + params["b_hh"]).astype(jnp.float32))      # (1, G)
    w_diff = (params["w_out"][0, :] - params["w_out"][1, :]).astype(jnp.float32)
    w_out_diff = jnp.zeros((G, 1), jnp.float32).at[:H, 0].set(w_diff)   # (G, 1)
    b_out_diff = (params["b_out"][0] - params["b_out"][1]
                  ).reshape(1, 1).astype(jnp.float32)                   # (1, 1)
    return {"w_ih": w_ih, "w_hh": w_hh, "b": b,
            "w_out_diff": w_out_diff, "b_out_diff": b_out_diff}


@functools.partial(jax.jit, static_argnames=("hidden_size",))
def lstm_softmax_relu_policy(x, prep, *, hidden_size):
    """x: (B, T, 2) f32, prep: output of prepare_params -> probs (B, 2)."""
    B, T, I = x.shape
    G = prep["w_hh"].shape[1]

    # Sublane-aligned batch block (multiple of 8); padded rows compute zeros
    # that are sliced off below.
    Bb = 128 if B > 128 else ((B + 7) // 8) * 8
    Bp = ((B + Bb - 1) // Bb) * Bb

    x_tm = jnp.transpose(x, (1, 0, 2))                       # (T, B, I) time-major
    x_tm = jnp.pad(x_tm, ((0, 0), (0, Bp - B), (0, 0)))      # (T, Bp, I)

    kernel = functools.partial(lstm_policy_kernel, hidden_size=hidden_size)
    # TODO(synk): at long T, add an "arbitrary" time-tiling axis so the hoisted
    # xw slab stays inside v7x's 32 MiB scoped-VMEM default.
    out = pl.pallas_call(
        kernel,
        out_shape=jax.ShapeDtypeStruct((Bp, 2), jnp.float32),
        grid=(Bp // Bb,),
        in_specs=[
            pl.BlockSpec((T, Bb, I), lambda b: (0, b, 0)),
            pl.BlockSpec((I, G), lambda b: (0, 0)),
            pl.BlockSpec((G, G), lambda b: (0, 0)),
            pl.BlockSpec((1, G), lambda b: (0, 0)),
            pl.BlockSpec((G, 1), lambda b: (0, 0)),
            pl.BlockSpec((1, 1), lambda b: (0, 0)),
        ],
        out_specs=pl.BlockSpec((Bb, 2), lambda b: (b, 0)),
        compiler_params=pltpu.CompilerParams(
            dimension_semantics=("parallel",)),   # megacore over batch blocks
    )(x_tm, prep["w_ih"], prep["w_hh"], prep["b"],
      prep["w_out_diff"], prep["b_out_diff"])
    return out[:B]


def init_params(key, hidden_size=16, input_size=2, out_size=2):
    """Deterministic init mimicking PyTorch's U(-1/sqrt(H), 1/sqrt(H))."""
    H, I = hidden_size, input_size
    k = jax.random.split(key, 8)
    s = 1.0 / np.sqrt(H)
    u = lambda kk, shape: jax.random.uniform(kk, shape, jnp.float32, -s, s)
    return {
        "w_ih": u(k[0], (4 * H, I)),    # PyTorch weight_ih_l0
        "w_hh": u(k[1], (4 * H, H)),    # PyTorch weight_hh_l0
        "b_ih": u(k[2], (4 * H,)),
        "b_hh": u(k[3], (4 * H,)),
        # hidden_layer params exist in __init__ but are unused in forward();
        # kept only for shape fidelity with the PyTorch module.
        "w_hid": u(k[4], (H, H)),
        "b_hid": u(k[5], (H,)),
        "w_out": u(k[6], (out_size, H)),
        "b_out": u(k[7], (out_size,)),
    }


def reference_forward(x, params):
    """Pure-JAX reference (same math as torch.nn.LSTM + Linear + softmax)."""
    B, T, I = x.shape
    H = params["w_hh"].shape[1]
    h = jnp.zeros((B, H), jnp.float32)
    c = jnp.zeros((B, H), jnp.float32)
    w_ih_t, w_hh_t = params["w_ih"].T, params["w_hh"].T
    b = params["b_ih"] + params["b_hh"]
    for t in range(T):
        g = x[:, t, :] @ w_ih_t + h @ w_hh_t + b
        i = jax.nn.sigmoid(g[:, :H])
        f = jax.nn.sigmoid(g[:, H:2 * H])
        gg = jnp.tanh(g[:, 2 * H:3 * H])
        o = jax.nn.sigmoid(g[:, 3 * H:])
        c = f * c + i * gg
        h = o * jnp.tanh(c)
    hid = jnp.maximum(h, 0.0)
    logits = hid @ params["w_out"].T + params["b_out"]
    return jax.nn.softmax(logits, axis=-1)


if __name__ == "__main__":
    B, T, I, H = 2, 8, 2, 16
    key = jax.random.PRNGKey(0)
    k_x, k_p = jax.random.split(key)
    x = jax.random.normal(k_x, (B, T, I), jnp.float32)
    params = init_params(k_p, hidden_size=H, input_size=I, out_size=2)

    # One-time weight prep (cached across calls in real use).
    prep = prepare_params(params)

    out = lstm_softmax_relu_policy(x, prep, hidden_size=H)
    out = jax.block_until_ready(out)

    ref = reference_forward(x, params)
    np.testing.assert_allclose(np.asarray(out), np.asarray(ref),
                               rtol=2e-3, atol=2e-3)
    assert out.shape == (B, 2)
    print("KERNEL_OK")
</pallas_src>

<mosaic_0001>
module attributes {stable_mosaic.version = 11 : i64} {
  func.func @lstm_policy_kernel(%arg0: i32, %arg1: memref<8x8x2xf32, #tpu.memory_space<vmem>>, %arg2: memref<2x128xf32, #tpu.memory_space<vmem>>, %arg3: memref<128x128xf32, #tpu.memory_space<vmem>>, %arg4: memref<1x128xf32, #tpu.memory_space<vmem>>, %arg5: memref<128x1xf32, #tpu.memory_space<vmem>>, %arg6: memref<1x1xf32, #tpu.memory_space<vmem>>, %arg7: memref<8x2xf32, #tpu.memory_space<vmem>>) attributes {dimension_semantics = [#tpu.dimension_semantics<parallel>], iteration_bounds = array<i64: 1>, scalar_prefetch = 0 : i64, scratch_operands = 0 : i64, tpu.core_type = #tpu.core_type<tc>, window_params = [{transform_indices = @transform_0, window_bounds = array<i64: 8, 8, 2>}, {pipeline_mode = #tpu.pipeline_mode<synchronous>, transform_indices = @transform_1, window_bounds = array<i64: 2, 128>}, {pipeline_mode = #tpu.pipeline_mode<synchronous>, transform_indices = @transform_2, window_bounds = array<i64: 128, 128>}, {pipeline_mode = #tpu.pipeline_mode<synchronous>, transform_indices = @transform_3, window_bounds = array<i64: 1, 128>}, {pipeline_mode = #tpu.pipeline_mode<synchronous>, transform_indices = @transform_4, window_bounds = array<i64: 128, 1>}, {pipeline_mode = #tpu.pipeline_mode<synchronous>, transform_indices = @transform_5, window_bounds = array<i64: 1, 1>}, {transform_indices = @transform_6, window_bounds = array<i64: 8, 2>}]} {
    %c0 = arith.constant 0 : index
    %c0_0 = arith.constant 0 : index
    %c0_1 = arith.constant 0 : index
    %0 = vector.load %arg1[%c0, %c0_0, %c0_1] : memref<8x8x2xf32, #tpu.memory_space<vmem>>, vector<8x8x2xf32>
    %c0_2 = arith.constant 0 : index
    %c0_3 = arith.constant 0 : index
    %1 = vector.load %arg2[%c0_2, %c0_3] : memref<2x128xf32, #tpu.memory_space<vmem>>, vector<2x128xf32>
    %2 = vector.extract_strided_slice %0 {offsets = [0, 0, 0], sizes = [8, 8, 1], strides = [1, 1, 1]} : vector<8x8x2xf32> to vector<8x8x1xf32>
    %3 = vector.extract_strided_slice %1 {offsets = [0, 0], sizes = [1, 128], strides = [1, 1]} : vector<2x128xf32> to vector<1x128xf32>
    %4 = vector.shape_cast %3 : vector<1x128xf32> to vector<1x1x128xf32>
    %5 = vector.broadcast %2 : vector<8x8x1xf32> to vector<8x8x128xf32>
    %6 = vector.broadcast %4 : vector<1x1x128xf32> to vector<8x8x128xf32>
    %7 = arith.mulf %5, %6 : vector<8x8x128xf32>
    %c0_4 = arith.constant 0 : index
    %c0_5 = arith.constant 0 : index
    %8 = vector.load %arg4[%c0_4, %c0_5] : memref<1x128xf32, #tpu.memory_space<vmem>>, vector<1x128xf32>
    %9 = vector.shape_cast %8 : vector<1x128xf32> to vector<1x1x128xf32>
    %10 = vector.broadcast %9 : vector<1x1x128xf32> to vector<8x8x128xf32>
    %11 = arith.addf %7, %10 : vector<8x8x128xf32>
    %12 = vector.extract_strided_slice %0 {offsets = [0, 0, 1], sizes = [8, 8, 1], strides = [1, 1, 1]} : vector<8x8x2xf32> to vector<8x8x1xf32>
    %13 = vector.extract_strided_slice %1 {offsets = [1, 0], sizes = [1, 128], strides = [1, 1]} : vector<2x128xf32> to vector<1x128xf32>
    %14 = vector.shape_cast %13 : vector<1x128xf32> to vector<1x1x128xf32>
    %15 = vector.broadcast %12 : vector<8x8x1xf32> to vector<8x8x128xf32>
    %16 = vector.broadcast %14 : vector<1x1x128xf32> to vector<8x8x128xf32>
    %17 = arith.mulf %15, %16 : vector<8x8x128xf32>
    %18 = arith.addf %11, %17 : vector<8x8x128xf32>
    %19 = tpu.iota {dimensions = array<i32: 1>} : vector<8x128xi32>
    %c16_i32 = arith.constant 16 : i32
    %20 = vector.broadcast %c16_i32 : i32 to vector<8x128xi32>
    %21 = arith.cmpi slt, %19, %20 : vector<8x128xi32>
    %cst = arith.constant 1.000000e+00 : f32
    %cst_6 = arith.constant 0.000000e+00 : f32
    %22 = vector.broadcast %cst : f32 to vector<8x128xf32>
    %23 = vector.broadcast %cst_6 : f32 to vector<8x128xf32>
    %24 = arith.select %21, %22, %23 : vector<8x128xi1>, vector<8x128xf32>
    %cst_7 = arith.constant 0.000000e+00 : f32
    %25 = vector.broadcast %cst_7 : f32 to vector<8x128xf32>
    %cst_8 = arith.constant 0.000000e+00 : f32
    %26 = vector.broadcast %cst_8 : f32 to vector<8x128xf32>
    %27 = vector.extract_strided_slice %18 {offsets = [0, 0, 0], sizes = [1, 8, 128], strides = [1, 1, 1]} : vector<8x8x128xf32> to vector<1x8x128xf32>
    %28 = vector.shape_cast %27 : vector<1x8x128xf32> to vector<8x128xf32>
    %c0_9 = arith.constant 0 : index
    %c0_10 = arith.constant 0 : index
    %29 = vector.load %arg3[%c0_9, %c0_10] : memref<128x128xf32, #tpu.memory_space<vmem>>, vector<128x128xf32>
    %cst_11 = arith.constant dense<0.000000e+00> : vector<8x128xf32>
    %30 = tpu.matmul %25, %29, %cst_11 {dimension_numbers = #tpu.dot_dimension_numbers<[1], [0], [0], [1], [0, 0, 1, 1], [], []>} : vector<8x128xf32>, vector<128x128xf32>, vector<8x128xf32> -> vector<8x128xf32>
    %31 = arith.addf %28, %30 : vector<8x128xf32>
    %cst_12 = arith.constant 5.000000e-01 : f32
    %32 = vector.broadcast %cst_12 : f32 to vector<8x128xf32>
    %33 = arith.mulf %32, %31 : vector<8x128xf32>
    %34 = math.tanh %33 : vector<8x128xf32>
    %cst_13 = arith.constant 5.000000e-01 : f32
    %35 = vector.broadcast %cst_13 : f32 to vector<8x128xf32>
    %36 = arith.mulf %35, %34 : vector<8x128xf32>
    %cst_14 = arith.constant 5.000000e-01 : f32
    %37 = vector.broadcast %cst_14 : f32 to vector<8x128xf32>
    %38 = arith.addf %36, %37 : vector<8x128xf32>
    %39 = math.tanh %31 : vector<8x128xf32>
    %c112_i32 = arith.constant 112 : i32
    %40 = tpu.dynamic_rotate %38 by %c112_i32 dim 1 : vector<8x128xf32>, i32 -> vector<8x128xf32>
    %c96_i32 = arith.constant 96 : i32
    %41 = tpu.dynamic_rotate %39 by %c96_i32 dim 1 : vector<8x128xf32>, i32 -> vector<8x128xf32>
    %c80_i32 = arith.constant 80 : i32
    %42 = tpu.dynamic_rotate %38 by %c80_i32 dim 1 : vector<8x128xf32>, i32 -> vector<8x128xf32>
    %43 = arith.mulf %40, %26 : vector<8x128xf32>
    %44 = arith.mulf %38, %41 : vector<8x128xf32>
    %45 = arith.addf %43, %44 : vector<8x128xf32>
    %46 = arith.mulf %45, %24 : vector<8x128xf32>
    %47 = math.tanh %46 : vector<8x128xf32>
    %48 = arith.mulf %42, %47 : vector<8x128xf32>
    %49 = vector.extract_strided_slice %18 {offsets = [1, 0, 0], sizes = [1, 8, 128], strides = [1, 1, 1]} : vector<8x8x128xf32> to vector<1x8x128xf32>
    %50 = vector.shape_cast %49 : vector<1x8x128xf32> to vector<8x128xf32>
    %c0_15 = arith.constant 0 : index
    %c0_16 = arith.constant 0 : index
    %51 = vector.load %arg3[%c0_15, %c0_16] : memref<128x128xf32, #tpu.memory_space<vmem>>, vector<128x128xf32>
    %cst_17 = arith.constant dense<0.000000e+00> : vector<8x128xf32>
    %52 = tpu.matmul %48, %51, %cst_17 {dimension_numbers = #tpu.dot_dimension_numbers<[1], [0], [0], [1], [0, 0, 1, 1], [], []>} : vector<8x128xf32>, vector<128x128xf32>, vector<8x128xf32> -> vector<8x128xf32>
    %53 = arith.addf %50, %52 : vector<8x128xf32>
    %cst_18 = arith.constant 5.000000e-01 : f32
    %54 = vector.broadcast %cst_18 : f32 to vector<8x128xf32>
    %55 = arith.mulf %54, %53 : vector<8x128xf32>
    %56 = math.tanh %55 : vector<8x128xf32>
    %cst_19 = arith.constant 5.000000e-01 : f32
    %57 = vector.broadcast %cst_19 : f32 to vector<8x128xf32>
    %58 = arith.mulf %57, %56 : vector<8x128xf32>
    %cst_20 = arith.constant 5.000000e-01 : f32
    %59 = vector.broadcast %cst_20 : f32 to vector<8x128xf32>
    %60 = arith.addf %58, %59 : vector<8x128xf32>
    %61 = math.tanh %53 : vector<8x128xf32>
    %c112_i32_21 = arith.constant 112 : i32
    %62 = tpu.dynamic_rotate %60 by %c112_i32_21 dim 1 : vector<8x128xf32>, i32 -> vector<8x128xf32>
    %c96_i32_22 = arith.constant 96 : i32
    %63 = tpu.dynamic_rotate %61 by %c96_i32_22 dim 1 : vector<8x128xf32>, i32 -> vector<8x128xf32>
    %c80_i32_23 = arith.constant 80 : i32
    %64 = tpu.dynamic_rotate %60 by %c80_i32_23 dim 1 : vector<8x128xf32>, i32 -> vector<8x128xf32>
    %65 = arith.mulf %62, %46 : vector<8x128xf32>
    %66 = arith.mulf %60, %63 : vector<8x128xf32>
    %67 = arith.addf %65, %66 : vector<8x128xf32>
    %68 = arith.mulf %67, %24 : vector<8x128xf32>
    %69 = math.tanh %68 : vector<8x128xf32>
    %70 = arith.mulf %64, %69 : vector<8x128xf32>
    %71 = vector.extract_strided_slice %18 {offsets = [2, 0, 0], sizes = [1, 8, 128], strides = [1, 1, 1]} : vector<8x8x128xf32> to vector<1x8x128xf32>
    %72 = vector.shape_cast %71 : vector<1x8x128xf32> to vector<8x128xf32>
    %c0_24 = arith.constant 0 : index
    %c0_25 = arith.constant 0 : index
    %73 = vector.load %arg3[%c0_24, %c0_25] : memref<128x128xf32, #tpu.memory_space<vmem>>, vector<128x128xf32>
    %cst_26 = arith.constant dense<0.000000e+00> : vector<8x128xf32>
    %74 = tpu.matmul %70, %73, %cst_26 {dimension_numbers = #tpu.dot_dimension_numbers<[1], [0], [0], [1], [0, 0, 1, 1], [], []>} : vector<8x128xf32>, vector<128x128xf32>, vector<8x128xf32> -> vector<8x128xf32>
    %75 = arith.addf %72, %74 : vector<8x128xf32>
    %cst_27 = arith.constant 5.000000e-01 : f32
    %76 = vector.broadcast %cst_27 : f32 to vector<8x128xf32>
    %77 = arith.mulf %76, %75 : vector<8x128xf32>
    %78 = math.tanh %77 : vector<8x128xf32>
    %cst_28 = arith.constant 5.000000e-01 : f32
    %79 = vector.broadcast %cst_28 : f32 to vector<8x128xf32>
    %80 = arith.mulf %79, %78 : vector<8x128xf32>
    %cst_29 = arith.constant 5.000000e-01 : f32
    %81 = vector.broadcast %cst_29 : f32 to vector<8x128xf32>
    %82 = arith.addf %80, %81 : vector<8x128xf32>
    %83 = math.tanh %75 : vector<8x128xf32>
    %c112_i32_30 = arith.constant 112 : i32
    %84 = tpu.dynamic_rotate %82 by %c112_i32_30 dim 1 : vector<8x128xf32>, i32 -> vector<8x128xf32>
    %c96_i32_31 = arith.constant 96 : i32
    %85 = tpu.dynamic_rotate %83 by %c96_i32_31 dim 1 : vector<8x128xf32>, i32 -> vector<8x128xf32>
    %c80_i32_32 = arith.constant 80 : i32
    %86 = tpu.dynamic_rotate %82 by %c80_i32_32 dim 1 : vector<8x128xf32>, i32 -> vector<8x128xf32>
    %87 = arith.mulf %84, %68 : vector<8x128xf32>
    %88 = arith.mulf %82, %85 : vector<8x128xf32>
    %89 = arith.addf %87, %88 : vector<8x128xf32>
    %90 = arith.mulf %89, %24 : vector<8x128xf32>
    %91 = math.tanh %90 : vector<8x128xf32>
    %92 = arith.mulf %86, %91 : vector<8x128xf32>
    %93 = vector.extract_strided_slice %18 {offsets = [3, 0, 0], sizes = [1, 8, 128], strides = [1, 1, 1]} : vector<8x8x128xf32> to vector<1x8x128xf32>
    %94 = vector.shape_cast %93 : vector<1x8x128xf32> to vector<8x128xf32>
    %c0_33 = arith.constant 0 : index
    %c0_34 = arith.constant 0 : index
    %95 = vector.load %arg3[%c0_33, %c0_34] : memref<128x128xf32, #tpu.memory_space<vmem>>, vector<128x128xf32>
    %cst_35 = arith.constant dense<0.000000e+00> : vector<8x128xf32>
    %96 = tpu.matmul %92, %95, %cst_35 {dimension_numbers = #tpu.dot_dimension_numbers<[1], [0], [0], [1], [0, 0, 1, 1], [], []>} : vector<8x128xf32>, vector<128x128xf32>, vector<8x128xf32> -> vector<8x128xf32>
    %97 = arith.addf %94, %96 : vector<8x128xf32>
    %cst_36 = arith.constant 5.000000e-01 : f32
    %98 = vector.broadcast %cst_36 : f32 to vector<8x128xf32>
    %99 = arith.mulf %98, %97 : vector<8x128xf32>
    %100 = math.tanh %99 : vector<8x128xf32>
    %cst_37 = arith.constant 5.000000e-01 : f32
    %101 = vector.broadcast %cst_37 : f32 to vector<8x128xf32>
    %102 = arith.mulf %101, %100 : vector<8x128xf32>
    %cst_38 = arith.constant 5.000000e-01 : f32
    %103 = vector.broadcast %cst_38 : f32 to vector<8x128xf32>
    %104 = arith.addf %102, %103 : vector<8x128xf32>
    %105 = math.tanh %97 : vector<8x128xf32>
    %c112_i32_39 = arith.constant 112 : i32
    %106 = tpu.dynamic_rotate %104 by %c112_i32_39 dim 1 : vector<8x128xf32>, i32 -> vector<8x128xf32>
    %c96_i32_40 = arith.constant 96 : i32
    %107 = tpu.dynamic_rotate %105 by %c96_i32_40 dim 1 : vector<8x128xf32>, i32 -> vector<8x128xf32>
    %c80_i32_41 = arith.constant 80 : i32
    %108 = tpu.dynamic_rotate %104 by %c80_i32_41 dim 1 : vector<8x128xf32>, i32 -> vector<8x128xf32>
    %109 = arith.mulf %106, %90 : vector<8x128xf32>
    %110 = arith.mulf %104, %107 : vector<8x128xf32>
    %111 = arith.addf %109, %110 : vector<8x128xf32>
    %112 = arith.mulf %111, %24 : vector<8x128xf32>
    %113 = math.tanh %112 : vector<8x128xf32>
    %114 = arith.mulf %108, %113 : vector<8x128xf32>
    %115 = vector.extract_strided_slice %18 {offsets = [4, 0, 0], sizes = [1, 8, 128], strides = [1, 1, 1]} : vector<8x8x128xf32> to vector<1x8x128xf32>
    %116 = vector.shape_cast %115 : vector<1x8x128xf32> to vector<8x128xf32>
    %c0_42 = arith.constant 0 : index
    %c0_43 = arith.constant 0 : index
    %117 = vector.load %arg3[%c0_42, %c0_43] : memref<128x128xf32, #tpu.memory_space<vmem>>, vector<128x128xf32>
    %cst_44 = arith.constant dense<0.000000e+00> : vector<8x128xf32>
    %118 = tpu.matmul %114, %117, %cst_44 {dimension_numbers = #tpu.dot_dimension_numbers<[1], [0], [0], [1], [0, 0, 1, 1], [], []>} : vector<8x128xf32>, vector<128x128xf32>, vector<8x128xf32> -> vector<8x128xf32>
    %119 = arith.addf %116, %118 : vector<8x128xf32>
    %cst_45 = arith.constant 5.000000e-01 : f32
    %120 = vector.broadcast %cst_45 : f32 to vector<8x128xf32>
    %121 = arith.mulf %120, %119 : vector<8x128xf32>
    %122 = math.tanh %121 : vector<8x128xf32>
    %cst_46 = arith.constant 5.000000e-01 : f32
    %123 = vector.broadcast %cst_46 : f32 to vector<8x128xf32>
    %124 = arith.mulf %123, %122 : vector<8x128xf32>
    %cst_47 = arith.constant 5.000000e-01 : f32
    %125 = vector.broadcast %cst_47 : f32 to vector<8x128xf32>
    %126 = arith.addf %124, %125 : vector<8x128xf32>
    %127 = math.tanh %119 : vector<8x128xf32>
    %c112_i32_48 = arith.constant 112 : i32
    %128 = tpu.dynamic_rotate %126 by %c112_i32_48 dim 1 : vector<8x128xf32>, i32 -> vector<8x128xf32>
    %c96_i32_49 = arith.constant 96 : i32
    %129 = tpu.dynamic_rotate %127 by %c96_i32_49 dim 1 : vector<8x128xf32>, i32 -> vector<8x128xf32>
    %c80_i32_50 = arith.constant 80 : i32
    %130 = tpu.dynamic_rotate %126 by %c80_i32_50 dim 1 : vector<8x128xf32>, i32 -> vector<8x128xf32>
    %131 = arith.mulf %128, %112 : vector<8x128xf32>
    %132 = arith.mulf %126, %129 : vector<8x128xf32>
    %133 = arith.addf %131, %132 : vector<8x128xf32>
    %134 = arith.mulf %133, %24 : vector<8x128xf32>
    %135 = math.tanh %134 : vector<8x128xf32>
    %136 = arith.mulf %130, %135 : vector<8x128xf32>
    %137 = vector.extract_strided_slice %18 {offsets = [5, 0, 0], sizes = [1, 8, 128], strides = [1, 1, 1]} : vector<8x8x128xf32> to vector<1x8x128xf32>
    %138 = vector.shape_cast %137 : vector<1x8x128xf32> to vector<8x128xf32>
    %c0_51 = arith.constant 0 : index
    %c0_52 = arith.constant 0 : index
    %139 = vector.load %arg3[%c0_51, %c0_52] : memref<128x128xf32, #tpu.memory_space<vmem>>, vector<128x128xf32>
    %cst_53 = arith.constant dense<0.000000e+00> : vector<8x128xf32>
    %140 = tpu.matmul %136, %139, %cst_53 {dimension_numbers = #tpu.dot_dimension_numbers<[1], [0], [0], [1], [0, 0, 1, 1], [], []>} : vector<8x128xf32>, vector<128x128xf32>, vector<8x128xf32> -> vector<8x128xf32>
    %141 = arith.addf %138, %140 : vector<8x128xf32>
    %cst_54 = arith.constant 5.000000e-01 : f32
    %142 = vector.broadcast %cst_54 : f32 to vector<8x128xf32>
    %143 = arith.mulf %142, %141 : vector<8x128xf32>
    %144 = math.tanh %143 : vector<8x128xf32>
    %cst_55 = arith.constant 5.000000e-01 : f32
    %145 = vector.broadcast %cst_55 : f32 to vector<8x128xf32>
    %146 = arith.mulf %145, %144 : vector<8x128xf32>
    %cst_56 = arith.constant 5.000000e-01 : f32
    %147 = vector.broadcast %cst_56 : f32 to vector<8x128xf32>
    %148 = arith.addf %146, %147 : vector<8x128xf32>
    %149 = math.tanh %141 : vector<8x128xf32>
    %c112_i32_57 = arith.constant 112 : i32
    %150 = tpu.dynamic_rotate %148 by %c112_i32_57 dim 1 : vector<8x128xf32>, i32 -> vector<8x128xf32>
    %c96_i32_58 = arith.constant 96 : i32
    %151 = tpu.dynamic_rotate %149 by %c96_i32_58 dim 1 : vector<8x128xf32>, i32 -> vector<8x128xf32>
    %c80_i32_59 = arith.constant 80 : i32
    %152 = tpu.dynamic_rotate %148 by %c80_i32_59 dim 1 : vector<8x128xf32>, i32 -> vector<8x128xf32>
    %153 = arith.mulf %150, %134 : vector<8x128xf32>
    %154 = arith.mulf %148, %151 : vector<8x128xf32>
    %155 = arith.addf %153, %154 : vector<8x128xf32>
    %156 = arith.mulf %155, %24 : vector<8x128xf32>
    %157 = math.tanh %156 : vector<8x128xf32>
    %158 = arith.mulf %152, %157 : vector<8x128xf32>
    %159 = vector.extract_strided_slice %18 {offsets = [6, 0, 0], sizes = [1, 8, 128], strides = [1, 1, 1]} : vector<8x8x128xf32> to vector<1x8x128xf32>
    %160 = vector.shape_cast %159 : vector<1x8x128xf32> to vector<8x128xf32>
    %c0_60 = arith.constant 0 : index
    %c0_61 = arith.constant 0 : index
    %161 = vector.load %arg3[%c0_60, %c0_61] : memref<128x128xf32, #tpu.memory_space<vmem>>, vector<128x128xf32>
    %cst_62 = arith.constant dense<0.000000e+00> : vector<8x128xf32>
    %162 = tpu.matmul %158, %161, %cst_62 {dimension_numbers = #tpu.dot_dimension_numbers<[1], [0], [0], [1], [0, 0, 1, 1], [], []>} : vector<8x128xf32>, vector<128x128xf32>, vector<8x128xf32> -> vector<8x128xf32>
    %163 = arith.addf %160, %162 : vector<8x128xf32>
    %cst_63 = arith.constant 5.000000e-01 : f32
    %164 = vector.broadcast %cst_63 : f32 to vector<8x128xf32>
    %165 = arith.mulf %164, %163 : vector<8x128xf32>
    %166 = math.tanh %165 : vector<8x128xf32>
    %cst_64 = arith.constant 5.000000e-01 : f32
    %167 = vector.broadcast %cst_64 : f32 to vector<8x128xf32>
    %168 = arith.mulf %167, %166 : vector<8x128xf32>
    %cst_65 = arith.constant 5.000000e-01 : f32
    %169 = vector.broadcast %cst_65 : f32 to vector<8x128xf32>
    %170 = arith.addf %168, %169 : vector<8x128xf32>
    %171 = math.tanh %163 : vector<8x128xf32>
    %c112_i32_66 = arith.constant 112 : i32
    %172 = tpu.dynamic_rotate %170 by %c112_i32_66 dim 1 : vector<8x128xf32>, i32 -> vector<8x128xf32>
    %c96_i32_67 = arith.constant 96 : i32
    %173 = tpu.dynamic_rotate %171 by %c96_i32_67 dim 1 : vector<8x128xf32>, i32 -> vector<8x128xf32>
    %c80_i32_68 = arith.constant 80 : i32
    %174 = tpu.dynamic_rotate %170 by %c80_i32_68 dim 1 : vector<8x128xf32>, i32 -> vector<8x128xf32>
    %175 = arith.mulf %172, %156 : vector<8x128xf32>
    %176 = arith.mulf %170, %173 : vector<8x128xf32>
    %177 = arith.addf %175, %176 : vector<8x128xf32>
    %178 = arith.mulf %177, %24 : vector<8x128xf32>
    %179 = math.tanh %178 : vector<8x128xf32>
    %180 = arith.mulf %174, %179 : vector<8x128xf32>
    %181 = vector.extract_strided_slice %18 {offsets = [7, 0, 0], sizes = [1, 8, 128], strides = [1, 1, 1]} : vector<8x8x128xf32> to vector<1x8x128xf32>
    %182 = vector.shape_cast %181 : vector<1x8x128xf32> to vector<8x128xf32>
    %c0_69 = arith.constant 0 : index
    %c0_70 = arith.constant 0 : index
    %183 = vector.load %arg3[%c0_69, %c0_70] : memref<128x128xf32, #tpu.memory_space<vmem>>, vector<128x128xf32>
    %cst_71 = arith.constant dense<0.000000e+00> : vector<8x128xf32>
    %184 = tpu.matmul %180, %183, %cst_71 {dimension_numbers = #tpu.dot_dimension_numbers<[1], [0], [0], [1], [0, 0, 1, 1], [], []>} : vector<8x128xf32>, vector<128x128xf32>, vector<8x128xf32> -> vector<8x128xf32>
    %185 = arith.addf %182, %184 : vector<8x128xf32>
    %cst_72 = arith.constant 5.000000e-01 : f32
    %186 = vector.broadcast %cst_72 : f32 to vector<8x128xf32>
    %187 = arith.mulf %186, %185 : vector<8x128xf32>
    %188 = math.tanh %187 : vector<8x128xf32>
    %cst_73 = arith.constant 5.000000e-01 : f32
    %189 = vector.broadcast %cst_73 : f32 to vector<8x128xf32>
    %190 = arith.mulf %189, %188 : vector<8x128xf32>
    %cst_74 = arith.constant 5.000000e-01 : f32
    %191 = vector.broadcast %cst_74 : f32 to vector<8x128xf32>
    %192 = arith.addf %190, %191 : vector<8x128xf32>
    %193 = math.tanh %185 : vector<8x128xf32>
    %c112_i32_75 = arith.constant 112 : i32
    %194 = tpu.dynamic_rotate %192 by %c112_i32_75 dim 1 : vector<8x128xf32>, i32 -> vector<8x128xf32>
    %c96_i32_76 = arith.constant 96 : i32
    %195 = tpu.dynamic_rotate %193 by %c96_i32_76 dim 1 : vector<8x128xf32>, i32 -> vector<8x128xf32>
    %c80_i32_77 = arith.constant 80 : i32
    %196 = tpu.dynamic_rotate %192 by %c80_i32_77 dim 1 : vector<8x128xf32>, i32 -> vector<8x128xf32>
    %197 = arith.mulf %194, %178 : vector<8x128xf32>
    %198 = arith.mulf %192, %195 : vector<8x128xf32>
    %199 = arith.addf %197, %198 : vector<8x128xf32>
    %200 = arith.mulf %199, %24 : vector<8x128xf32>
    %201 = math.tanh %200 : vector<8x128xf32>
    %202 = arith.mulf %196, %201 : vector<8x128xf32>
    %cst_78 = arith.constant 0.000000e+00 : f32
    %203 = vector.broadcast %cst_78 : f32 to vector<8x128xf32>
    %204 = arith.maximumf %202, %203 : vector<8x128xf32>
    %c0_79 = arith.constant 0 : index
    %c0_80 = arith.constant 0 : index
    %205 = vector.load %arg5[%c0_79, %c0_80] : memref<128x1xf32, #tpu.memory_space<vmem>>, vector<128x1xf32>
    %cst_81 = arith.constant dense<0.000000e+00> : vector<8x1xf32>
    %206 = tpu.matmul %204, %205, %cst_81 {dimension_numbers = #tpu.dot_dimension_numbers<[1], [0], [0], [1], [0, 0, 1, 1], [], []>} : vector<8x128xf32>, vector<128x1xf32>, vector<8x1xf32> -> vector<8x1xf32>
    %c0_82 = arith.constant 0 : index
    %c0_83 = arith.constant 0 : index
    %207 = vector.load %arg6[%c0_82, %c0_83] : memref<1x1xf32, #tpu.memory_space<vmem>>, vector<1x1xf32>
    %208 = vector.broadcast %207 : vector<1x1xf32> to vector<8x1xf32>
    %209 = arith.addf %206, %208 : vector<8x1xf32>
    %cst_84 = arith.constant 5.000000e-01 : f32
    %210 = vector.broadcast %cst_84 : f32 to vector<8x1xf32>
    %211 = arith.mulf %210, %209 : vector<8x1xf32>
    %212 = math.tanh %211 : vector<8x1xf32>
    %cst_85 = arith.constant 5.000000e-01 : f32
    %213 = vector.broadcast %cst_85 : f32 to vector<8x1xf32>
    %214 = arith.mulf %213, %212 : vector<8x1xf32>
    %cst_86 = arith.constant 5.000000e-01 : f32
    %215 = vector.broadcast %cst_86 : f32 to vector<8x1xf32>
    %216 = arith.addf %214, %215 : vector<8x1xf32>
    %217 = tpu.iota {dimensions = array<i32: 1>} : vector<8x2xi32>
    %218 = vector.shape_cast %216 : vector<8x1xf32> to vector<8x1xf32>
    %219 = vector.broadcast %218 : vector<8x1xf32> to vector<8x2xf32>
    %c0_i32 = arith.constant 0 : i32
    %220 = vector.broadcast %c0_i32 : i32 to vector<8x2xi32>
    %221 = arith.cmpi eq, %217, %220 : vector<8x2xi32>
    %cst_87 = arith.constant 1.000000e+00 : f32
    %222 = vector.broadcast %cst_87 : f32 to vector<8x2xf32>
    %223 = arith.subf %222, %219 : vector<8x2xf32>
    %224 = arith.select %221, %219, %223 : vector<8x2xi1>, vector<8x2xf32>
    %c0_88 = arith.constant 0 : index
    %c0_89 = arith.constant 0 : index
    %225 = vector.load %arg7[%c0_88, %c0_89] : memref<8x2xf32, #tpu.memory_space<vmem>>, vector<8x2xf32>
    tpu.vector_store %arg7[%c0_88, %c0_89], %224 {strides = array<i32>} : memref<8x2xf32, #tpu.memory_space<vmem>>, vector<8x2xf32>,
    return
  }
  func.func @transform_0(%arg0: i32) -> (i32, i32, i32) {
    %c0_i32 = arith.constant 0 : i32
    %c0_i32_0 = arith.constant 0 : i32
    %c0_i32_1 = arith.constant 0 : i32
    return %c0_i32, %arg0, %c0_i32_0 : i32, i32, i32
  }
  func.func @transform_1(%arg0: i32) -> (i32, i32) {
    %c0_i32 = arith.constant 0 : i32
    %c0_i32_0 = arith.constant 0 : i32
    %c0_i32_1 = arith.constant 0 : i32
    return %c0_i32, %c0_i32_0 : i32, i32
  }
  func.func @transform_2(%arg0: i32) -> (i32, i32) {
    %c0_i32 = arith.constant 0 : i32
    %c0_i32_0 = arith.constant 0 : i32
    %c0_i32_1 = arith.constant 0 : i32
    return %c0_i32, %c0_i32_0 : i32, i32
  }
  func.func @transform_3(%arg0: i32) -> (i32, i32) {
    %c0_i32 = arith.constant 0 : i32
    %c0_i32_0 = arith.constant 0 : i32
    %c0_i32_1 = arith.constant 0 : i32
    return %c0_i32, %c0_i32_0 : i32, i32
  }
  func.func @transform_4(%arg0: i32) -> (i32, i32) {
    %c0_i32 = arith.constant 0 : i32
    %c0_i32_0 = arith.constant 0 : i32
    %c0_i32_1 = arith.constant 0 : i32
    return %c0_i32, %c0_i32_0 : i32, i32
  }
  func.func @transform_5(%arg0: i32) -> (i32, i32) {
    %c0_i32 = arith.constant 0 : i32
    %c0_i32_0 = arith.constant 0 : i32
    %c0_i32_1 = arith.constant 0 : i32
    return %c0_i32, %c0_i32_0 : i32, i32
  }
  func.func @transform_6(%arg0: i32) -> (i32, i32) {
    %c0_i32 = arith.constant 0 : i32
    %c0_i32_0 = arith.constant 0 : i32
    return %arg0, %c0_i32 : i32, i32
  }
}

</mosaic_0001>

<llo_original>
// kernel: lstm_softmax_relu_policy.1
$region0: #{lstm_softmax_relu_policy.1}
  #allocation0 [shape = 'u32[]', space=smem, size = 0x4, offset = 0x4, fixed_abs, tag = 'smem constant byte address 0x4 - core index']
  #allocation1 [shape = 'u32[72,128]{1,0:T(1,128)}', space=vmem, size = 0x9000, scoped, tag = 'internal scratch']
  #allocation2 [shape = 'f32[1,1]{1,0:T(1,128)S(1)}', space=vmem, size = 0x200, scoped, tag = 'scoped memory for lstm_softmax_relu_policy.1']
  %s0 = inlined_call_operand.vmem [shape: f32[8,8,2], index: 0, kind: input, shape index: {}]
  %s1 = inlined_call_operand.vmem [shape: f32[2,128], index: 1, kind: input, shape index: {}]
  %s2 = inlined_call_operand.vmem [shape: f32[128,128], index: 2, kind: input, shape index: {}]
  %s3 = inlined_call_operand.vmem [shape: f32[1,128], index: 3, kind: input, shape index: {}]
  %s4 = inlined_call_operand.vmem [shape: f32[128,1], index: 4, kind: input, shape index: {}]
  %s5 = inlined_call_operand.<no memory space> [shape: f32[1,1], index: 5, kind: input, shape index: {}]
  %s6 = inlined_call_operand.vmem [shape: f32[8,2], index: 6, kind: output, shape index: {}]
  %s7 = sld [smem:[#allocation0]]
  $region34: #{lstm_softmax_relu_policy.1} parent=0
    _
  %s9 = ssub.s32 1, %s7
  %s10 = scalar_select 0, %s9, %s7
  %v11 = vstv %s5
  %12 = vst [vmem:[#allocation2] sm:$0x1] %v11
  // Predicated region
  $region2: #{lstm_softmax_relu_policy.1} parent=0 // pred_check
    _
  $region3: #{lstm_softmax_relu_policy.1} parent=0 // pred_check_branch
    %14 = sbr.rel (0) target = $region5
  $region4: #{lstm_softmax_relu_policy.1} parent=0 // pred_region
    _
  $region5: #{lstm_softmax_relu_policy.1} parent=0 // pred_fallthru
    _
  // Predicated region
  $region6: #{lstm_softmax_relu_policy.1} parent=0 // pred_check
    _
  $region7: #{lstm_softmax_relu_policy.1} parent=0 // pred_check_branch
    %16 = sbr.rel (0) target = $region9
  $region8: #{lstm_softmax_relu_policy.1} parent=0 // pred_region
    _
  $region9: #{lstm_softmax_relu_policy.1} parent=0 // pred_fallthru
    _
  // Predicated region
  $region10: #{lstm_softmax_relu_policy.1} parent=0 // pred_check
    _
  $region11: #{lstm_softmax_relu_policy.1} parent=0 // pred_check_branch
    %18 = sbr.rel (0) target = $region13
  $region12: #{lstm_softmax_relu_policy.1} parent=0 // pred_region
    _
  $region13: #{lstm_softmax_relu_policy.1} parent=0 // pred_fallthru
    _
  // Predicated region
  $region14: #{lstm_softmax_relu_policy.1} parent=0 // pred_check
    _
  $region15: #{lstm_softmax_relu_policy.1} parent=0 // pred_check_branch
    %20 = sbr.rel (0) target = $region17
  $region16: #{lstm_softmax_relu_policy.1} parent=0 // pred_region
    _
  $region17: #{lstm_softmax_relu_policy.1} parent=0 // pred_fallthru
    _
  // Predicated region
  $region18: #{lstm_softmax_relu_policy.1} parent=0 // pred_check
    _
  $region19: #{lstm_softmax_relu_policy.1} parent=0 // pred_check_branch
    %22 = sbr.rel (0) target = $region21
  $region20: #{lstm_softmax_relu_policy.1} parent=0 // pred_region
    _
  $region21: #{lstm_softmax_relu_policy.1} parent=0 // pred_fallthru
    _
  // Predicated region
  $region22: #{lstm_softmax_relu_policy.1} parent=0 // pred_check
    _
  $region23: #{lstm_softmax_relu_policy.1} parent=0 // pred_check_branch
    %24 = sbr.rel (0) target = $region25
  $region24: #{lstm_softmax_relu_policy.1} parent=0 // pred_region
    _
  $region25: #{lstm_softmax_relu_policy.1} parent=0 // pred_fallthru
    _
  %v25 = vld [vmem:[%s0] sm:$0xff]
  %v26 = vld [vmem:[%s0 + $0x8] sm:$0xff]
  %v27 = vld [vmem:[%s0 + $0x10] sm:$0xff]
  %v28 = vld [vmem:[%s0 + $0x18] sm:$0xff]
  %v29 = vld [vmem:[%s0 + $0x20] sm:$0xff]
  %v30 = vld [vmem:[%s0 + $0x28] sm:$0xff]
  %v31 = vld [vmem:[%s0 + $0x30] sm:$0xff]
  %v32 = vld [vmem:[%s0 + $0x38] sm:$0xff]
  %v33 = vld [vmem:[%s1] sm:$0x3]
  %35 = vset.pattern.permute.xlu0 0
  %36 = vperm.xlu0 %35, %v25
  %v37 = vpop.permute.xlu0 %36
  %40 = vset.pattern.permute.xlu0 0
  %41 = vperm.xlu0 %40, %v26
  %v42 = vpop.permute.xlu0 %41
  %45 = vset.pattern.permute.xlu0 0
  %46 = vperm.xlu0 %45, %v27
  %v47 = vpop.permute.xlu0 %46
  %50 = vset.pattern.permute.xlu0 0
  %51 = vperm.xlu0 %50, %v28
  %v52 = vpop.permute.xlu0 %51
  %55 = vset.pattern.permute.xlu0 0
  %56 = vperm.xlu0 %55, %v29
  %v57 = vpop.permute.xlu0 %56
  %60 = vset.pattern.permute.xlu0 0
  %61 = vperm.xlu0 %60, %v30
  %v62 = vpop.permute.xlu0 %61
  %65 = vset.pattern.permute.xlu0 0
  %66 = vperm.xlu0 %65, %v31
  %v67 = vpop.permute.xlu0 %66
  %70 = vset.pattern.permute.xlu0 0
  %71 = vperm.xlu0 %70, %v32
  %v72 = vpop.permute.xlu0 %71
  %v74 = vperm.slane %v33, 0
  %v75 = vmul.f32 %v37, %v74
  %v76 = vmul.f32 %v42, %v74
  %v77 = vmul.f32 %v47, %v74
  %v78 = vmul.f32 %v52, %v74
  %v79 = vmul.f32 %v57, %v74
  %v80 = vmul.f32 %v62, %v74
  %v81 = vmul.f32 %v67, %v74
  %v82 = vmul.f32 %v72, %v74
  %v83 = vld [vmem:[%s3] sm:$0x1]
  %v85 = vperm.slane %v83, 0
  %v87 = vadd.f32 %v75, %v85
  %v88 = vadd.f32 %v76, %v85
  %v89 = vadd.f32 %v77, %v85
  %v90 = vadd.f32 %v78, %v85
  %v91 = vadd.f32 %v79, %v85
  %v92 = vadd.f32 %v80, %v85
  %v93 = vadd.f32 %v81, %v85
  %v94 = vadd.f32 %v82, %v85
  %95 = vset.pattern.permute.xlu0 1
  %96 = vperm.xlu0 %95, %v25
  %v97 = vpop.permute.xlu0 %96
  %99 = vset.pattern.permute.xlu0 1
  %100 = vperm.xlu0 %99, %v26
  %v101 = vpop.permute.xlu0 %100
  %103 = vset.pattern.permute.xlu0 1
  %104 = vperm.xlu0 %103, %v27
  %v105 = vpop.permute.xlu0 %104
  %107 = vset.pattern.permute.xlu0 1
  %108 = vperm.xlu0 %107, %v28
  %v109 = vpop.permute.xlu0 %108
  %111 = vset.pattern.permute.xlu0 1
  %112 = vperm.xlu0 %111, %v29
  %v113 = vpop.permute.xlu0 %112
  %115 = vset.pattern.permute.xlu0 1
  %116 = vperm.xlu0 %115, %v30
  %v117 = vpop.permute.xlu0 %116
  %119 = vset.pattern.permute.xlu0 1
  %120 = vperm.xlu0 %119, %v31
  %v121 = vpop.permute.xlu0 %120
  %123 = vset.pattern.permute.xlu0 1
  %124 = vperm.xlu0 %123, %v32
  %v125 = vpop.permute.xlu0 %124
  %v127 = vperm.slane %v33, 1
  %v128 = vmul.f32 %v97, %v127
  %v129 = vmul.f32 %v101, %v127
  %v130 = vmul.f32 %v105, %v127
  %v131 = vmul.f32 %v109, %v127
  %v132 = vmul.f32 %v113, %v127
  %v133 = vmul.f32 %v117, %v127
  %v134 = vmul.f32 %v121, %v127
  %v135 = vmul.f32 %v125, %v127
  %v136 = vadd.f32 %v87, %v128
  %v137 = vadd.f32 %v88, %v129
  %v138 = vadd.f32 %v89, %v130
  %v139 = vadd.f32 %v90, %v131
  %v140 = vadd.f32 %v91, %v132
  %v141 = vadd.f32 %v92, %v133
  %v142 = vadd.f32 %v93, %v134
  %v143 = vadd.f32 %v94, %v135
  %v144 = vlaneseq
  %v145 = vand.u32 %v144, 127
  %vm146 = vcmp.lt.s32.totalorder %v145, 16
  %v147 = vsel %vm146, 1.0, 0.0
  %v148 = vld [vmem:[%s2] sm:$0xff]
  %v149 = vld [vmem:[%s2 + $0x8] sm:$0xff]
  %v150 = vld [vmem:[%s2 + $0x10] sm:$0xff]
  %v151 = vld [vmem:[%s2 + $0x18] sm:$0xff]
  %v152 = vld [vmem:[%s2 + $0x20] sm:$0xff]
  %v153 = vld [vmem:[%s2 + $0x28] sm:$0xff]
  %v154 = vld [vmem:[%s2 + $0x30] sm:$0xff]
  %v155 = vld [vmem:[%s2 + $0x38] sm:$0xff]
  %v156 = vld [vmem:[%s2 + $0x40] sm:$0xff]
  %v157 = vld [vmem:[%s2 + $0x48] sm:$0xff]
  %v158 = vld [vmem:[%s2 + $0x50] sm:$0xff]
  %v159 = vld [vmem:[%s2 + $0x58] sm:$0xff]
  %v160 = vld [vmem:[%s2 + $0x60] sm:$0xff]
  %v161 = vld [vmem:[%s2 + $0x68] sm:$0xff]
  %v162 = vld [vmem:[%s2 + $0x70] sm:$0xff]
  %v163 = vld [vmem:[%s2 + $0x78] sm:$0xff]
  %164 = vmatpush.msra.mxu0 %v163
  %165 = vmatpush.msra.mxu0 %v162
  %166 = vmatpush.msra.mxu0 %v161
  %167 = vmatpush.msra.mxu0 %v160
  %168 = vmatpush.msra.mxu0 %v159
  %169 = vmatpush.msra.mxu0 %v158
  %170 = vmatpush.msra.mxu0 %v157
  %171 = vmatpush.msra.mxu0 %v156
  %172 = vmatpush.msra.mxu0 %v155
  %173 = vmatpush.msra.mxu0 %v154
  %174 = vmatpush.msra.mxu0 %v153
  %175 = vmatpush.msra.mxu0 %v152
  %176 = vmatpush.msra.mxu0 %v151
  %177 = vmatpush.msra.mxu0 %v150
  %178 = vmatpush.msra.mxu0 %v149
  %179 = vmatpush.msra.mxu0 %v148
  %180 = vmatmul.f32.gmra.mxu0 0.0
  %v181 = vpop.f32.mrf.mxu0
  %v182 = vadd.f32 0.0, %v181
  %183 = vdwg.mxu0
  %v184 = vadd.f32 %v136, %v182
  %v185 = vmul.f32 %v184, 0.5
  %v186 = vtanh.pop %v185
  %v187 = vmul.f32 %v186, 0.5
  %v188 = vadd.f32 %v187, 0.5
  %v189 = vtanh.pop %v184
  %190 = vrot.lane.b32.xlu0 %v188, 112
  %v191 = vpop.permute.xlu0 %190
  %192 = vrot.lane.b32.xlu0 %v189, 96
  %v193 = vpop.permute.xlu0 %192
  %194 = vrot.lane.b32.xlu0 %v188, 80
  %v195 = vpop.permute.xlu0 %194
  %v196 = vmul.f32 %v191, 0.0
  %v197 = vmul.f32 %v188, %v193
  %v198 = vadd.f32 %v196, %v197
  %v199 = vmul.f32 %v198, %v147
  %v200 = vtanh.pop %v199
  %v201 = vmul.f32 %v195, %v200
  %202 = vmatpush.msra.mxu0 %v163
  %203 = vmatpush.msra.mxu0 %v162
  %204 = vmatpush.msra.mxu0 %v161
  %205 = vmatpush.msra.mxu0 %v160
  %206 = vmatpush.msra.mxu0 %v159
  %207 = vmatpush.msra.mxu0 %v158
  %208 = vmatpush.msra.mxu0 %v157
  %209 = vmatpush.msra.mxu0 %v156
  %210 = vmatpush.msra.mxu0 %v155
  %211 = vmatpush.msra.mxu0 %v154
  %212 = vmatpush.msra.mxu0 %v153
  %213 = vmatpush.msra.mxu0 %v152
  %214 = vmatpush.msra.mxu0 %v151
  %215 = vmatpush.msra.mxu0 %v150
  %216 = vmatpush.msra.mxu0 %v149
  %217 = vmatpush.msra.mxu0 %v148
  %218 = vmatmul.f32.gmra.mxu0 %v201
  %v219 = vpop.f32.mrf.mxu0
  %v220 = vadd.f32 0.0, %v219
  %221 = vdwg.mxu0
  %v222 = vadd.f32 %v137, %v220
  %v223 = vmul.f32 %v222, 0.5
  %v224 = vtanh.pop %v223
  %v225 = vmul.f32 %v224, 0.5
  %v226 = vadd.f32 %v225, 0.5
  %v227 = vtanh.pop %v222
  %228 = vrot.lane.b32.xlu0 %v226, 112
  %v229 = vpop.permute.xlu0 %228
  %230 = vrot.lane.b32.xlu0 %v227, 96
  %v231 = vpop.permute.xlu0 %230
  %232 = vrot.lane.b32.xlu0 %v226, 80
  %v233 = vpop.permute.xlu0 %232
  %v234 = vmul.f32 %v229, %v199
  %v235 = vmul.f32 %v226, %v231
  %v236 = vadd.f32 %v234, %v235
  %v237 = vmul.f32 %v236, %v147
  %v238 = vtanh.pop %v237
  %v239 = vmul.f32 %v233, %v238
  %240 = vmatpush.msra.mxu0 %v163
  %241 = vmatpush.msra.mxu0 %v162
  %242 = vmatpush.msra.mxu0 %v161
  %243 = vmatpush.msra.mxu0 %v160
  %244 = vmatpush.msra.mxu0 %v159
  %245 = vmatpush.msra.mxu0 %v158
  %246 = vmatpush.msra.mxu0 %v157
  %247 = vmatpush.msra.mxu0 %v156
  %248 = vmatpush.msra.mxu0 %v155
  %249 = vmatpush.msra.mxu0 %v154
  %250 = vmatpush.msra.mxu0 %v153
  %251 = vmatpush.msra.mxu0 %v152
  %252 = vmatpush.msra.mxu0 %v151
  %253 = vmatpush.msra.mxu0 %v150
  %254 = vmatpush.msra.mxu0 %v149
  %255 = vmatpush.msra.mxu0 %v148
  %256 = vmatmul.f32.gmra.mxu0 %v239
  %v257 = vpop.f32.mrf.mxu0
  %v258 = vadd.f32 0.0, %v257
  %259 = vdwg.mxu0
  %v260 = vadd.f32 %v138, %v258
  %v261 = vmul.f32 %v260, 0.5
  %v262 = vtanh.pop %v261
  %v263 = vmul.f32 %v262, 0.5
  %v264 = vadd.f32 %v263, 0.5
  %v265 = vtanh.pop %v260
  %266 = vrot.lane.b32.xlu0 %v264, 112
  %v267 = vpop.permute.xlu0 %266
  %268 = vrot.lane.b32.xlu0 %v265, 96
  %v269 = vpop.permute.xlu0 %268
  %270 = vrot.lane.b32.xlu0 %v264, 80
  %v271 = vpop.permute.xlu0 %270
  %v272 = vmul.f32 %v267, %v237
  %v273 = vmul.f32 %v264, %v269
  %v274 = vadd.f32 %v272, %v273
  %v275 = vmul.f32 %v274, %v147
  %v276 = vtanh.pop %v275
  %v277 = vmul.f32 %v271, %v276
  %278 = vmatpush.msra.mxu0 %v163
  %279 = vmatpush.msra.mxu0 %v162
  %280 = vmatpush.msra.mxu0 %v161
  %281 = vmatpush.msra.mxu0 %v160
  %282 = vmatpush.msra.mxu0 %v159
  %283 = vmatpush.msra.mxu0 %v158
  %284 = vmatpush.msra.mxu0 %v157
  %285 = vmatpush.msra.mxu0 %v156
  %286 = vmatpush.msra.mxu0 %v155
  %287 = vmatpush.msra.mxu0 %v154
  %288 = vmatpush.msra.mxu0 %v153
  %289 = vmatpush.msra.mxu0 %v152
  %290 = vmatpush.msra.mxu0 %v151
  %291 = vmatpush.msra.mxu0 %v150
  %292 = vmatpush.msra.mxu0 %v149
  %293 = vmatpush.msra.mxu0 %v148
  %294 = vmatmul.f32.gmra.mxu0 %v277
  %v295 = vpop.f32.mrf.mxu0
  %v296 = vadd.f32 0.0, %v295
  %297 = vdwg.mxu0
  %v298 = vadd.f32 %v139, %v296
  %v299 = vmul.f32 %v298, 0.5
  %v300 = vtanh.pop %v299
  %v301 = vmul.f32 %v300, 0.5
  %v302 = vadd.f32 %v301, 0.5
  %v303 = vtanh.pop %v298
  %304 = vrot.lane.b32.xlu0 %v302, 112
  %v305 = vpop.permute.xlu0 %304
  %306 = vrot.lane.b32.xlu0 %v303, 96
  %v307 = vpop.permute.xlu0 %306
  %308 = vrot.lane.b32.xlu0 %v302, 80
  %v309 = vpop.permute.xlu0 %308
  %v310 = vmul.f32 %v305, %v275
  %v311 = vmul.f32 %v302, %v307
  %v312 = vadd.f32 %v310, %v311
  %v313 = vmul.f32 %v312, %v147
  %v314 = vtanh.pop %v313
  %v315 = vmul.f32 %v309, %v314
  %316 = vmatpush.msra.mxu0 %v163
  %317 = vmatpush.msra.mxu0 %v162
  %318 = vmatpush.msra.mxu0 %v161
  %319 = vmatpush.msra.mxu0 %v160
  %320 = vmatpush.msra.mxu0 %v159
  %321 = vmatpush.msra.mxu0 %v158
  %322 = vmatpush.msra.mxu0 %v157
  %323 = vmatpush.msra.mxu0 %v156
  %324 = vmatpush.msra.mxu0 %v155
  %325 = vmatpush.msra.mxu0 %v154
  %326 = vmatpush.msra.mxu0 %v153
  %327 = vmatpush.msra.mxu0 %v152
  %328 = vmatpush.msra.mxu0 %v151
  %329 = vmatpush.msra.mxu0 %v150
  %330 = vmatpush.msra.mxu0 %v149
  %331 = vmatpush.msra.mxu0 %v148
  %332 = vmatmul.f32.gmra.mxu0 %v315
  %v333 = vpop.f32.mrf.mxu0
  %v334 = vadd.f32 0.0, %v333
  %335 = vdwg.mxu0
  %v336 = vadd.f32 %v140, %v334
  %v337 = vmul.f32 %v336, 0.5
  %v338 = vtanh.pop %v337
  %v339 = vmul.f32 %v338, 0.5
  %v340 = vadd.f32 %v339, 0.5
  %v341 = vtanh.pop %v336
  %342 = vrot.lane.b32.xlu0 %v340, 112
  %v343 = vpop.permute.xlu0 %342
  %344 = vrot.lane.b32.xlu0 %v341, 96
  %v345 = vpop.permute.xlu0 %344
  %346 = vrot.lane.b32.xlu0 %v340, 80
  %v347 = vpop.permute.xlu0 %346
  %v348 = vmul.f32 %v343, %v313
  %v349 = vmul.f32 %v340, %v345
  %v350 = vadd.f32 %v348, %v349
  %v351 = vmul.f32 %v350, %v147
  %v352 = vtanh.pop %v351
  %v353 = vmul.f32 %v347, %v352
  %354 = vmatpush.msra.mxu0 %v163
  %355 = vmatpush.msra.mxu0 %v162
  %356 = vmatpush.msra.mxu0 %v161
  %357 = vmatpush.msra.mxu0 %v160
  %358 = vmatpush.msra.mxu0 %v159
  %359 = vmatpush.msra.mxu0 %v158
  %360 = vmatpush.msra.mxu0 %v157
  %361 = vmatpush.msra.mxu0 %v156
  %362 = vmatpush.msra.mxu0 %v155
  %363 = vmatpush.msra.mxu0 %v154
  %364 = vmatpush.msra.mxu0 %v153
  %365 = vmatpush.msra.mxu0 %v152
  %366 = vmatpush.msra.mxu0 %v151
  %367 = vmatpush.msra.mxu0 %v150
  %368 = vmatpush.msra.mxu0 %v149
  %369 = vmatpush.msra.mxu0 %v148
  %370 = vmatmul.f32.gmra.mxu0 %v353
  %v371 = vpop.f32.mrf.mxu0
  %v372 = vadd.f32 0.0, %v371
  %373 = vdwg.mxu0
  %v374 = vadd.f32 %v141, %v372
  %v375 = vmul.f32 %v374, 0.5
  %v376 = vtanh.pop %v375
  %v377 = vmul.f32 %v376, 0.5
  %v378 = vadd.f32 %v377, 0.5
  %v379 = vtanh.pop %v374
  %380 = vrot.lane.b32.xlu0 %v378, 112
  %v381 = vpop.permute.xlu0 %380
  %382 = vrot.lane.b32.xlu0 %v379, 96
  %v383 = vpop.permute.xlu0 %382
  %384 = vrot.lane.b32.xlu0 %v378, 80
  %v385 = vpop.permute.xlu0 %384
  %v386 = vmul.f32 %v381, %v351
  %v387 = vmul.f32 %v378, %v383
  %v388 = vadd.f32 %v386, %v387
  %v389 = vmul.f32 %v388, %v147
  %v390 = vtanh.pop %v389
  %v391 = vmul.f32 %v385, %v390
  %392 = vmatpush.msra.mxu0 %v163
  %393 = vmatpush.msra.mxu0 %v162
  %394 = vmatpush.msra.mxu0 %v161
  %395 = vmatpush.msra.mxu0 %v160
  %396 = vmatpush.msra.mxu0 %v159
  %397 = vmatpush.msra.mxu0 %v158
  %398 = vmatpush.msra.mxu0 %v157
  %399 = vmatpush.msra.mxu0 %v156
  %400 = vmatpush.msra.mxu0 %v155
  %401 = vmatpush.msra.mxu0 %v154
  %402 = vmatpush.msra.mxu0 %v153
  %403 = vmatpush.msra.mxu0 %v152
  %404 = vmatpush.msra.mxu0 %v151
  %405 = vmatpush.msra.mxu0 %v150
  %406 = vmatpush.msra.mxu0 %v149
  %407 = vmatpush.msra.mxu0 %v148
  %408 = vmatmul.f32.gmra.mxu0 %v391
  %v409 = vpop.f32.mrf.mxu0
  %v410 = vadd.f32 0.0, %v409
  %411 = vdwg.mxu0
  %v412 = vadd.f32 %v142, %v410
  %v413 = vmul.f32 %v412, 0.5
  %v414 = vtanh.pop %v413
  %v415 = vmul.f32 %v414, 0.5
  %v416 = vadd.f32 %v415, 0.5
  %v417 = vtanh.pop %v412
  %418 = vrot.lane.b32.xlu0 %v416, 112
  %v419 = vpop.permute.xlu0 %418
  %420 = vrot.lane.b32.xlu0 %v417, 96
  %v421 = vpop.permute.xlu0 %420
  %422 = vrot.lane.b32.xlu0 %v416, 80
  %v423 = vpop.permute.xlu0 %422
  %v424 = vmul.f32 %v419, %v389
  %v425 = vmul.f32 %v416, %v421
  %v426 = vadd.f32 %v424, %v425
  %v427 = vmul.f32 %v426, %v147
  %v428 = vtanh.pop %v427
  %v429 = vmul.f32 %v423, %v428
  %430 = vmatpush.msra.mxu0 %v163
  %431 = vmatpush.msra.mxu0 %v162
  %432 = vmatpush.msra.mxu0 %v161
  %433 = vmatpush.msra.mxu0 %v160
  %434 = vmatpush.msra.mxu0 %v159
  %435 = vmatpush.msra.mxu0 %v158
  %436 = vmatpush.msra.mxu0 %v157
  %437 = vmatpush.msra.mxu0 %v156
  %438 = vmatpush.msra.mxu0 %v155
  %439 = vmatpush.msra.mxu0 %v154
  %440 = vmatpush.msra.mxu0 %v153
  %441 = vmatpush.msra.mxu0 %v152
  %442 = vmatpush.msra.mxu0 %v151
  %443 = vmatpush.msra.mxu0 %v150
  %444 = vmatpush.msra.mxu0 %v149
  %445 = vmatpush.msra.mxu0 %v148
  %446 = vmatmul.f32.gmra.mxu0 %v429
  %v447 = vpop.f32.mrf.mxu0
  %v448 = vadd.f32 0.0, %v447
  %449 = vdwg.mxu0
  %v450 = vadd.f32 %v143, %v448
  %v451 = vmul.f32 %v450, 0.5
  %v452 = vtanh.pop %v451
  %v453 = vmul.f32 %v452, 0.5
  %v454 = vadd.f32 %v453, 0.5
  %v455 = vtanh.pop %v450
  %456 = vrot.lane.b32.xlu0 %v454, 112
  %v457 = vpop.permute.xlu0 %456
  %458 = vrot.lane.b32.xlu0 %v455, 96
  %v459 = vpop.permute.xlu0 %458
  %460 = vrot.lane.b32.xlu0 %v454, 80
  %v461 = vpop.permute.xlu0 %460
  %v462 = vmul.f32 %v457, %v427
  %v463 = vmul.f32 %v454, %v459
  %v464 = vadd.f32 %v462, %v463
  %v465 = vmul.f32 %v464, %v147
  %v466 = vtanh.pop %v465
  %v467 = vmul.f32 %v461, %v466
  %v468 = vmax.f32 %v467, 0.0
  %v469 = vld [vmem:[%s4] sm:$0xff]
  %v470 = vld [vmem:[%s4 + $0x8] sm:$0xff]
  %v471 = vld [vmem:[%s4 + $0x10] sm:$0xff]
  %v472 = vld [vmem:[%s4 + $0x18] sm:$0xff]
  %v473 = vld [vmem:[%s4 + $0x20] sm:$0xff]
  %v474 = vld [vmem:[%s4 + $0x28] sm:$0xff]
  %v475 = vld [vmem:[%s4 + $0x30] sm:$0xff]
  %v476 = vld [vmem:[%s4 + $0x38] sm:$0xff]
  %v477 = vld [vmem:[%s4 + $0x40] sm:$0xff]
  %v478 = vld [vmem:[%s4 + $0x48] sm:$0xff]
  %v479 = vld [vmem:[%s4 + $0x50] sm:$0xff]
  %v480 = vld [vmem:[%s4 + $0x58] sm:$0xff]
  %v481 = vld [vmem:[%s4 + $0x60] sm:$0xff]
  %v482 = vld [vmem:[%s4 + $0x68] sm:$0xff]
  %v483 = vld [vmem:[%s4 + $0x70] sm:$0xff]
  %v484 = vld [vmem:[%s4 + $0x78] sm:$0xff]
  %v485 = vld [vmem:[#allocation2] sm:$0x1]
  %v487 = vperm.slane %v485, 0
  %489 = vmatpush.msra.mxu0 %v484
  %490 = vmatpush.msra.mxu0 %v483
  %491 = vmatpush.msra.mxu0 %v482
  %492 = vmatpush.msra.mxu0 %v481
  %493 = vmatpush.msra.mxu0 %v480
  %494 = vmatpush.msra.mxu0 %v479
  %495 = vmatpush.msra.mxu0 %v478
  %496 = vmatpush.msra.mxu0 %v477
  %497 = vmatpush.msra.mxu0 %v476
  %498 = vmatpush.msra.mxu0 %v475
  %499 = vmatpush.msra.mxu0 %v474
  %500 = vmatpush.msra.mxu0 %v473
  %501 = vmatpush.msra.mxu0 %v472
  %502 = vmatpush.msra.mxu0 %v471
  %503 = vmatpush.msra.mxu0 %v470
  %504 = vmatpush.msra.mxu0 %v469
  %505 = vmatmul.f32.gmra.mxu0 %v468
  %v506 = vpop.f32.mrf.mxu0
  %v507 = vadd.f32 %v487, %v506
  %508 = vdwg.mxu0
  %v509 = vmul.f32 %v507, 0.5
  %v510 = vtanh.pop %v509
  %v511 = vmul.f32 %v510, 0.5
  %v512 = vadd.f32 %v511, 0.5
  %514 = vset.pattern.permute.xlu0 0
  %515 = vperm.xlu0 %514, %v512
  %v516 = vpop.permute.xlu0 %515
  %vm518 = vcmp.eq.s32.totalorder %v145, 0
  %v519 = vsub.f32 1.0, %v516
  %v520 = vsel %vm518, %v516, %v519
  %vm521 = vcmask 15360
  %522 = vst.msk [vmem:[%s6] sm:$0xff] %vm521, %v520
  // Predicated region
  $region26: #{lstm_softmax_relu_policy.1} parent=0 // pred_check
    _
  $region27: #{lstm_softmax_relu_policy.1} parent=0 // pred_check_branch
    %524 = sbr.rel (0) target = $region29
  $region28: #{lstm_softmax_relu_policy.1} parent=0 // pred_region
    _
  $region29: #{lstm_softmax_relu_policy.1} parent=0 // pred_fallthru
    _
  // Predicated region
  $region30: #{lstm_softmax_relu_policy.1} parent=0 // pred_check
    _
  $region31: #{lstm_softmax_relu_policy.1} parent=0 // pred_check_branch
    %526 = sbr.rel (0) target = $region33
  $region32: #{lstm_softmax_relu_policy.1} parent=0 // pred_region
    _
  $region33: #{lstm_softmax_relu_policy.1} parent=0 // pred_fallthru
    _

</llo_original>
